<compile_context>
chip_gen: v7x
topology: tpu7x:2x2x1
jax: 0.10.0
libtpu: 0.0.40
codegen_flags: <defaults>
</compile_context>

<pallas_src>
import jax
import jax.numpy as jnp
from jax import lax
from jax.experimental import pallas as pl
from jax.experimental.pallas import tpu as pltpu

LANES = 128
MAX_TILE_ROWS = 1024   # 1024*128*4B = 512 KiB per stream buffer (3 streams x 2 bufs ~ 3 MiB)


def _lane_view(x):
    """Copy-free 2-D view of `x` for lane-dense streaming.

    If the element count divides 128 we present a fully lane-dense
    (n // 128, 128) view (free bitcast reshape); otherwise we collapse the
    leading dims and keep the original last dim on the lane axis.  Never
    pads, so no extra HBM copy is materialized."""
    n = int(x.size)
    if n % LANES == 0:
        return x.reshape(n // LANES, LANES)
    if x.ndim >= 2:
        return x.reshape(-1, x.shape[-1])
    return x.reshape(1, n)


def dnn_loss(mel, mel_postnet, duration_predicted, mel_target,
             duration_predictor_target):
    """Returns (mel_loss, mel_postnet_loss, duration_predictor_loss) f32 scalars."""
    assert mel.shape == mel_target.shape == mel_postnet.shape
    assert duration_predicted.shape == duration_predictor_target.shape

    n_mel = int(mel.size)                 # true element count (B*T*M)
    n_dur = int(duration_predicted.size)  # true element count (B*T)

    # Copy-free 2-D views in native dtype (upcast happens inside the kernel).
    mel2d = _lane_view(mel)
    post2d = _lane_view(mel_postnet)
    tgt2d = _lane_view(mel_target)
    durp2d = _lane_view(duration_predicted)
    durt2d = _lane_view(duration_predictor_target)

    view_rows, view_cols = mel2d.shape

    # Row tiling: a single full-extent block for small inputs (always legal),
    # otherwise 1024 rows (multiple of 8/16/32 -> legal for f32/bf16/int8).
    tile_rows = view_rows if view_rows <= MAX_TILE_ROWS else MAX_TILE_ROWS
    num_tiles = pl.cdiv(view_rows, tile_rows)
    needs_mask = (view_rows % tile_rows) != 0   # static: mask only if last tile partial

    # vreg-sized accumulators when the tile allows the sublane-group pre-sum.
    if tile_rows % 8 == 0:
        acc_rows, groups = 8, tile_rows // 8
    else:
        acc_rows, groups = tile_rows, 1

    inv_n_mel = 1.0 / float(n_mel)
    inv_n_dur = 1.0 / float(n_dur)

    def kernel(mel_ref, post_ref, tgt_ref, dp_ref, dt_ref, out_ref,
               acc_mel, acc_post):
        i = pl.program_id(0)
        last = pl.num_programs(0) - 1

        @pl.when(i == 0)
        def _init():
            acc_mel[...] = jnp.zeros_like(acc_mel)
            acc_post[...] = jnp.zeros_like(acc_post)

        def accumulate(masked):
            # In-kernel upcast (no wrapper-side astype copies / extra bytes).
            tgt = tgt_ref[...].astype(jnp.float32)
            d_mel = mel_ref[...].astype(jnp.float32) - tgt
            d_post = post_ref[...].astype(jnp.float32) - tgt
            if masked:
                # Zero out rows past the true extent of the (partial) last block.
                row = lax.broadcasted_iota(jnp.int32, (tile_rows, view_cols), 0)
                valid = (i * tile_rows + row) < view_rows
                d_mel = jnp.where(valid, d_mel, 0.0)
                d_post = jnp.where(valid, d_post, 0.0)
            sq_mel = d_mel * d_mel
            sq_post = d_post * d_post
            if groups > 1:
                # Pre-reduce over sublane groups (pure VALU adds) so the
                # accumulators stay one vreg row tall.
                sq_mel = sq_mel.reshape(groups, acc_rows, view_cols).sum(axis=0)
                sq_post = sq_post.reshape(groups, acc_rows, view_cols).sum(axis=0)
            acc_mel[...] += sq_mel
            acc_post[...] += sq_post

        # Hot loop: unmasked, pure VPU elementwise work, no cross-lane reduce.
        @pl.when(i < last)
        def _hot():
            accumulate(masked=False)

        # Last step: (optionally masked) accumulate + single finalize reduce.
        @pl.when(i == last)
        def _tail():
            accumulate(masked=needs_mask)
            mel_loss = jnp.sum(acc_mel[...]) * inv_n_mel
            post_loss = jnp.sum(acc_post[...]) * inv_n_mel
            # Duration L1 (.float() on the target matches PyTorch); the tiny
            # resident blocks are reduced exactly once, here.
            dur = jnp.abs(dp_ref[...].astype(jnp.float32)
                          - dt_ref[...].astype(jnp.float32))
            dur_loss = jnp.sum(dur) * inv_n_dur
            lane = lax.broadcasted_iota(jnp.int32, (1, LANES), 1)
            out_ref[...] = jnp.where(
                lane == 0, mel_loss,
                jnp.where(lane == 1, post_loss,
                          jnp.where(lane == 2, dur_loss, 0.0)))

    mel_spec = pl.BlockSpec((tile_rows, view_cols), lambda i: (i, 0))
    dur_p_spec = pl.BlockSpec(durp2d.shape, lambda i: (0, 0))   # resident block
    dur_t_spec = pl.BlockSpec(durt2d.shape, lambda i: (0, 0))   # resident block
    out_spec = pl.BlockSpec((1, LANES), lambda i: (0, 0))       # lane-dense output

    bytes_accessed = (mel2d.size * mel2d.dtype.itemsize
                      + post2d.size * post2d.dtype.itemsize
                      + tgt2d.size * tgt2d.dtype.itemsize
                      + durp2d.size * durp2d.dtype.itemsize
                      + durt2d.size * durt2d.dtype.itemsize
                      + LANES * 4)
    cost = pl.CostEstimate(flops=6 * n_mel + 3 * n_dur,
                           transcendentals=0,
                           bytes_accessed=int(bytes_accessed))

    out = pl.pallas_call(
        kernel,
        out_shape=jax.ShapeDtypeStruct((1, LANES), jnp.float32),
        grid_spec=pltpu.PrefetchScalarGridSpec(
            num_scalar_prefetch=0,
            grid=(num_tiles,),
            in_specs=[mel_spec, mel_spec, mel_spec, dur_p_spec, dur_t_spec],
            out_specs=out_spec,
            scratch_shapes=[pltpu.VMEM((acc_rows, view_cols), jnp.float32),
                            pltpu.VMEM((acc_rows, view_cols), jnp.float32)],
        ),
        compiler_params=pltpu.CompilerParams(
            dimension_semantics=("arbitrary",)),
        cost_estimate=cost,
    )(mel2d, post2d, tgt2d, durp2d, durt2d)

    # TODO(synk): on v7x, shard the row axis across the 2 TensorCores
    # (pltpu.CORE_PARALLEL leading axis with per-core partial outputs) to claim
    # both cores' HBM bandwidth; kept single-core here for v5e/v6e portability.
    return out[0, 0], out[0, 1], out[0, 2]


if __name__ == "__main__":
    key = jax.random.PRNGKey(0)
    kb = jax.random.split(key, 5)

    B, T, M = 2, 8, 32  # batch, frames, mel bins

    mel = jax.random.normal(kb[0], (B, T, M), dtype=jnp.float32)
    mel_postnet = jax.random.normal(kb[1], (B, T, M), dtype=jnp.float32)
    mel_target = jax.random.normal(kb[2], (B, T, M), dtype=jnp.float32)
    duration_predicted = jax.random.normal(kb[3], (B, T), dtype=jnp.float32)
    duration_target = jax.random.randint(kb[4], (B, T), 0, 10, dtype=jnp.int32)

    mel_loss, mel_postnet_loss, dur_loss = dnn_loss(
        mel, mel_postnet, duration_predicted, mel_target, duration_target)
    jax.block_until_ready((mel_loss, mel_postnet_loss, dur_loss))

    # Pure-JAX reference check.
    ref_mel = jnp.mean((mel - mel_target) ** 2)
    ref_post = jnp.mean((mel_postnet - mel_target) ** 2)
    ref_dur = jnp.mean(jnp.abs(duration_predicted -
                               duration_target.astype(jnp.float32)))
    assert jnp.allclose(mel_loss, ref_mel, atol=1e-5), (mel_loss, ref_mel)
    assert jnp.allclose(mel_postnet_loss, ref_post, atol=1e-5), (mel_postnet_loss, ref_post)
    assert jnp.allclose(dur_loss, ref_dur, atol=1e-5), (dur_loss, ref_dur)

    print("KERNEL_OK")
</pallas_src>

<mosaic_0001>
module attributes {stable_mosaic.version = 11 : i64} {
  func.func @kernel(%arg0: i32, %arg1: memref<4x128xf32, #tpu.memory_space<vmem>>, %arg2: memref<4x128xf32, #tpu.memory_space<vmem>>, %arg3: memref<4x128xf32, #tpu.memory_space<vmem>>, %arg4: memref<2x8xf32, #tpu.memory_space<vmem>>, %arg5: memref<2x8xi32, #tpu.memory_space<vmem>>, %arg6: memref<1x128xf32, #tpu.memory_space<vmem>>, %arg7: memref<4x128xf32, #tpu.memory_space<vmem>>, %arg8: memref<4x128xf32, #tpu.memory_space<vmem>>) attributes {dimension_semantics = [#tpu.dimension_semantics<arbitrary>], iteration_bounds = array<i64: 1>, scalar_prefetch = 0 : i64, scratch_operands = 2 : i64, tpu.core_type = #tpu.core_type<tc>, window_params = [{transform_indices = @transform_0, window_bounds = array<i64: 4, 128>}, {transform_indices = @transform_1, window_bounds = array<i64: 4, 128>}, {transform_indices = @transform_2, window_bounds = array<i64: 4, 128>}, {pipeline_mode = #tpu.pipeline_mode<synchronous>, transform_indices = @transform_3, window_bounds = array<i64: 2, 8>}, {pipeline_mode = #tpu.pipeline_mode<synchronous>, transform_indices = @transform_4, window_bounds = array<i64: 2, 8>}, {pipeline_mode = #tpu.pipeline_mode<synchronous>, transform_indices = @transform_5, window_bounds = array<i64: 1, 128>}]} {
    %c0_i32 = arith.constant 0 : i32
    %0 = arith.cmpi eq, %arg0, %c0_i32 : i32
    %1 = arith.extui %0 : i1 to i32
    %c0_i32_0 = arith.constant 0 : i32
    %2 = arith.cmpi ne, %1, %c0_i32_0 : i32
    scf.if %2 {
      %cst = arith.constant 0.000000e+00 : f32
      %9 = vector.broadcast %cst : f32 to vector<4x128xf32>
      %c0 = arith.constant 0 : index
      %c0_5 = arith.constant 0 : index
      %10 = vector.load %arg7[%c0, %c0_5] : memref<4x128xf32, #tpu.memory_space<vmem>>, vector<4x128xf32>
      tpu.vector_store %arg7[%c0, %c0_5], %9 {strides = array<i32>} : memref<4x128xf32, #tpu.memory_space<vmem>>, vector<4x128xf32>,
      %cst_6 = arith.constant 0.000000e+00 : f32
      %11 = vector.broadcast %cst_6 : f32 to vector<4x128xf32>
      %c0_7 = arith.constant 0 : index
      %c0_8 = arith.constant 0 : index
      %12 = vector.load %arg8[%c0_7, %c0_8] : memref<4x128xf32, #tpu.memory_space<vmem>>, vector<4x128xf32>
      tpu.vector_store %arg8[%c0_7, %c0_8], %11 {strides = array<i32>} : memref<4x128xf32, #tpu.memory_space<vmem>>, vector<4x128xf32>,
    } else {
    }
    %c0_i32_1 = arith.constant 0 : i32
    %3 = arith.cmpi slt, %arg0, %c0_i32_1 : i32
    %4 = arith.extui %3 : i1 to i32
    %c0_i32_2 = arith.constant 0 : i32
    %5 = arith.cmpi ne, %4, %c0_i32_2 : i32
    scf.if %5 {
      %c0 = arith.constant 0 : index
      %c0_5 = arith.constant 0 : index
      %9 = vector.load %arg3[%c0, %c0_5] : memref<4x128xf32, #tpu.memory_space<vmem>>, vector<4x128xf32>
      %c0_6 = arith.constant 0 : index
      %c0_7 = arith.constant 0 : index
      %10 = vector.load %arg1[%c0_6, %c0_7] : memref<4x128xf32, #tpu.memory_space<vmem>>, vector<4x128xf32>
      %11 = arith.subf %10, %9 : vector<4x128xf32>
      %c0_8 = arith.constant 0 : index
      %c0_9 = arith.constant 0 : index
      %12 = vector.load %arg2[%c0_8, %c0_9] : memref<4x128xf32, #tpu.memory_space<vmem>>, vector<4x128xf32>
      %13 = arith.subf %12, %9 : vector<4x128xf32>
      %14 = arith.mulf %11, %11 : vector<4x128xf32>
      %15 = arith.mulf %13, %13 : vector<4x128xf32>
      %c0_10 = arith.constant 0 : index
      %c0_11 = arith.constant 0 : index
      %16 = vector.load %arg7[%c0_10, %c0_11] : memref<4x128xf32, #tpu.memory_space<vmem>>, vector<4x128xf32>
      %17 = arith.addf %16, %14 : vector<4x128xf32>
      %c0_12 = arith.constant 0 : index
      %c0_13 = arith.constant 0 : index
      %18 = vector.load %arg7[%c0_12, %c0_13] : memref<4x128xf32, #tpu.memory_space<vmem>>, vector<4x128xf32>
      tpu.vector_store %arg7[%c0_12, %c0_13], %17 {strides = array<i32>} : memref<4x128xf32, #tpu.memory_space<vmem>>, vector<4x128xf32>,
      %c0_14 = arith.constant 0 : index
      %c0_15 = arith.constant 0 : index
      %19 = vector.load %arg8[%c0_14, %c0_15] : memref<4x128xf32, #tpu.memory_space<vmem>>, vector<4x128xf32>
      %20 = arith.addf %19, %15 : vector<4x128xf32>
      %c0_16 = arith.constant 0 : index
      %c0_17 = arith.constant 0 : index
      %21 = vector.load %arg8[%c0_16, %c0_17] : memref<4x128xf32, #tpu.memory_space<vmem>>, vector<4x128xf32>
      tpu.vector_store %arg8[%c0_16, %c0_17], %20 {strides = array<i32>} : memref<4x128xf32, #tpu.memory_space<vmem>>, vector<4x128xf32>,
    } else {
    }
    %c0_i32_3 = arith.constant 0 : i32
    %6 = arith.cmpi eq, %arg0, %c0_i32_3 : i32
    %7 = arith.extui %6 : i1 to i32
    %c0_i32_4 = arith.constant 0 : i32
    %8 = arith.cmpi ne, %7, %c0_i32_4 : i32
    scf.if %8 {
      %c0 = arith.constant 0 : index
      %c0_5 = arith.constant 0 : index
      %9 = vector.load %arg3[%c0, %c0_5] : memref<4x128xf32, #tpu.memory_space<vmem>>, vector<4x128xf32>
      %c0_6 = arith.constant 0 : index
      %c0_7 = arith.constant 0 : index
      %10 = vector.load %arg1[%c0_6, %c0_7] : memref<4x128xf32, #tpu.memory_space<vmem>>, vector<4x128xf32>
      %11 = arith.subf %10, %9 : vector<4x128xf32>
      %c0_8 = arith.constant 0 : index
      %c0_9 = arith.constant 0 : index
      %12 = vector.load %arg2[%c0_8, %c0_9] : memref<4x128xf32, #tpu.memory_space<vmem>>, vector<4x128xf32>
      %13 = arith.subf %12, %9 : vector<4x128xf32>
      %14 = arith.mulf %11, %11 : vector<4x128xf32>
      %15 = arith.mulf %13, %13 : vector<4x128xf32>
      %c0_10 = arith.constant 0 : index
      %c0_11 = arith.constant 0 : index
      %16 = vector.load %arg7[%c0_10, %c0_11] : memref<4x128xf32, #tpu.memory_space<vmem>>, vector<4x128xf32>
      %17 = arith.addf %16, %14 : vector<4x128xf32>
      %c0_12 = arith.constant 0 : index
      %c0_13 = arith.constant 0 : index
      %18 = vector.load %arg7[%c0_12, %c0_13] : memref<4x128xf32, #tpu.memory_space<vmem>>, vector<4x128xf32>
      tpu.vector_store %arg7[%c0_12, %c0_13], %17 {strides = array<i32>} : memref<4x128xf32, #tpu.memory_space<vmem>>, vector<4x128xf32>,
      %c0_14 = arith.constant 0 : index
      %c0_15 = arith.constant 0 : index
      %19 = vector.load %arg8[%c0_14, %c0_15] : memref<4x128xf32, #tpu.memory_space<vmem>>, vector<4x128xf32>
      %20 = arith.addf %19, %15 : vector<4x128xf32>
      %c0_16 = arith.constant 0 : index
      %c0_17 = arith.constant 0 : index
      %21 = vector.load %arg8[%c0_16, %c0_17] : memref<4x128xf32, #tpu.memory_space<vmem>>, vector<4x128xf32>
      tpu.vector_store %arg8[%c0_16, %c0_17], %20 {strides = array<i32>} : memref<4x128xf32, #tpu.memory_space<vmem>>, vector<4x128xf32>,
      %c0_18 = arith.constant 0 : index
      %c0_19 = arith.constant 0 : index
      %22 = vector.load %arg7[%c0_18, %c0_19] : memref<4x128xf32, #tpu.memory_space<vmem>>, vector<4x128xf32>
      %23 = vector.shape_cast %22 : vector<4x128xf32> to vector<1x4x128xf32>
      %cst = arith.constant dense<0.000000e+00> : vector<1xf32>
      %24 = vector.multi_reduction <add>, %23, %cst [1, 2] : vector<1x4x128xf32> to vector<1xf32>
      %25 = vector.shape_cast %24 : vector<1xf32> to vector<1x1x1xf32>
      %26 = vector.extract %25[0, 0, 0] : f32 from vector<1x1x1xf32>
      %cst_20 = arith.constant 0.001953125 : f32
      %27 = arith.mulf %26, %cst_20 : f32
      %c0_21 = arith.constant 0 : index
      %c0_22 = arith.constant 0 : index
      %28 = vector.load %arg8[%c0_21, %c0_22] : memref<4x128xf32, #tpu.memory_space<vmem>>, vector<4x128xf32>
      %29 = vector.shape_cast %28 : vector<4x128xf32> to vector<1x4x128xf32>
      %cst_23 = arith.constant dense<0.000000e+00> : vector<1xf32>
      %30 = vector.multi_reduction <add>, %29, %cst_23 [1, 2] : vector<1x4x128xf32> to vector<1xf32>
      %31 = vector.shape_cast %30 : vector<1xf32> to vector<1x1x1xf32>
      %32 = vector.extract %31[0, 0, 0] : f32 from vector<1x1x1xf32>
      %cst_24 = arith.constant 0.001953125 : f32
      %33 = arith.mulf %32, %cst_24 : f32
      %c0_25 = arith.constant 0 : index
      %c0_26 = arith.constant 0 : index
      %34 = vector.load %arg4[%c0_25, %c0_26] : memref<2x8xf32, #tpu.memory_space<vmem>>, vector<2x8xf32>
      %c0_27 = arith.constant 0 : index
      %c0_28 = arith.constant 0 : index
      %35 = vector.load %arg5[%c0_27, %c0_28] : memref<2x8xi32, #tpu.memory_space<vmem>>, vector<2x8xi32>
      %36 = arith.sitofp %35 : vector<2x8xi32> to vector<2x8xf32>
      %37 = arith.subf %34, %36 : vector<2x8xf32>
      %38 = math.absf %37 : vector<2x8xf32>
      %39 = vector.shape_cast %38 : vector<2x8xf32> to vector<1x2x8xf32>
      %cst_29 = arith.constant dense<0.000000e+00> : vector<1xf32>
      %40 = vector.multi_reduction <add>, %39, %cst_29 [1, 2] : vector<1x2x8xf32> to vector<1xf32>
      %41 = vector.shape_cast %40 : vector<1xf32> to vector<1x1x1xf32>
      %42 = vector.extract %41[0, 0, 0] : f32 from vector<1x1x1xf32>
      %cst_30 = arith.constant 6.250000e-02 : f32
      %43 = arith.mulf %42, %cst_30 : f32
      %44 = tpu.iota {dimensions = array<i32: 1>} : vector<1x128xi32>
      %c0_i32_31 = arith.constant 0 : i32
      %45 = vector.broadcast %c0_i32_31 : i32 to vector<1x128xi32>
      %46 = arith.cmpi eq, %44, %45 : vector<1x128xi32>
      %c1_i32 = arith.constant 1 : i32
      %47 = vector.broadcast %c1_i32 : i32 to vector<1x128xi32>
      %48 = arith.cmpi eq, %44, %47 : vector<1x128xi32>
      %c2_i32 = arith.constant 2 : i32
      %49 = vector.broadcast %c2_i32 : i32 to vector<1x128xi32>
      %50 = arith.cmpi eq, %44, %49 : vector<1x128xi32>
      %cst_32 = arith.constant 0.000000e+00 : f32
      %51 = vector.broadcast %43 : f32 to vector<1x128xf32>
      %52 = vector.broadcast %cst_32 : f32 to vector<1x128xf32>
      %53 = arith.select %50, %51, %52 : vector<1x128xi1>, vector<1x128xf32>
      %54 = vector.broadcast %33 : f32 to vector<1x128xf32>
      %55 = arith.select %48, %54, %53 : vector<1x128xi1>, vector<1x128xf32>
      %56 = vector.broadcast %27 : f32 to vector<1x128xf32>
      %57 = arith.select %46, %56, %55 : vector<1x128xi1>, vector<1x128xf32>
      %c0_33 = arith.constant 0 : index
      %c0_34 = arith.constant 0 : index
      %58 = vector.load %arg6[%c0_33, %c0_34] : memref<1x128xf32, #tpu.memory_space<vmem>>, vector<1x128xf32>
      tpu.vector_store %arg6[%c0_33, %c0_34], %57 {strides = array<i32>} : memref<1x128xf32, #tpu.memory_space<vmem>>, vector<1x128xf32>,
    } else {
    }
    return
  }
  func.func @transform_0(%arg0: i32) -> (i32, i32) {
    %c0_i32 = arith.constant 0 : i32
    %c0_i32_0 = arith.constant 0 : i32
    return %arg0, %c0_i32 : i32, i32
  }
  func.func @transform_1(%arg0: i32) -> (i32, i32) {
    %c0_i32 = arith.constant 0 : i32
    %c0_i32_0 = arith.constant 0 : i32
    return %arg0, %c0_i32 : i32, i32
  }
  func.func @transform_2(%arg0: i32) -> (i32, i32) {
    %c0_i32 = arith.constant 0 : i32
    %c0_i32_0 = arith.constant 0 : i32
    return %arg0, %c0_i32 : i32, i32
  }
  func.func @transform_3(%arg0: i32) -> (i32, i32) {
    %c0_i32 = arith.constant 0 : i32
    %c0_i32_0 = arith.constant 0 : i32
    %c0_i32_1 = arith.constant 0 : i32
    return %c0_i32, %c0_i32_0 : i32, i32
  }
  func.func @transform_4(%arg0: i32) -> (i32, i32) {
    %c0_i32 = arith.constant 0 : i32
    %c0_i32_0 = arith.constant 0 : i32
    %c0_i32_1 = arith.constant 0 : i32
    return %c0_i32, %c0_i32_0 : i32, i32
  }
  func.func @transform_5(%arg0: i32) -> (i32, i32) {
    %c0_i32 = arith.constant 0 : i32
    %c0_i32_0 = arith.constant 0 : i32
    %c0_i32_1 = arith.constant 0 : i32
    return %c0_i32, %c0_i32_0 : i32, i32
  }
}

</mosaic_0001>

<llo_original>
// kernel: tpu_custom_call.1
$region0: #{tpu_custom_call.1}
  #allocation0 [shape = 'u32[]', space=smem, size = 0x4, offset = 0x4, fixed_abs, tag = 'smem constant byte address 0x4 - core index']
  #allocation1 [shape = 'u32[144,128]{1,0:T(1,128)}', space=vmem, size = 0x12000, scoped, tag = 'internal scratch']
  #allocation2 [shape = 'f32[4,128]{1,0:T(4,128)}', space=vmem, size = 0x800, scoped, tag = 'scratch operand']
  #allocation3 [shape = 'f32[4,128]{1,0:T(4,128)}', space=vmem, size = 0x800, scoped, tag = 'scratch operand']
  %s0 = inlined_call_operand.hbm [shape: f32[4,128], index: 0, kind: input, shape index: {}]
  %s1 = inlined_call_operand.hbm [shape: f32[4,128], index: 1, kind: input, shape index: {}]
  %s2 = inlined_call_operand.vmem [shape: f32[4,128], index: 2, kind: input, shape index: {}]
  %s3 = inlined_call_operand.vmem [shape: f32[2,8], index: 3, kind: input, shape index: {}]
  %s4 = inlined_call_operand.vmem [shape: s32[2,8], index: 4, kind: input, shape index: {}]
  %s5 = inlined_call_operand.hbm [shape: f32[1,128], index: 5, kind: output, shape index: {}]
  %s6 = sld [smem:[#allocation0]]
  $region50: #{tpu_custom_call.1} parent=0
    _
  %s8 = ssub.s32 1, %s6
  %s9 = scalar_select 0, %s8, %s6
  $region1: #{tpu_custom_call.1} parent=0
    #allocation4 [shape = 'u8[2048]{0}', space=vmem, size = 0x800, scoped, tag = 'input window, operand 0, single buffered']
    #allocation5 [shape = 's32[1]{0}', space=sflag, size = 0x4, scoped, tag = 'scoped memory for tpu_custom_call.1']
    #allocation6 [shape = 's32[1]{0}', space=sflag, size = 0x4, scoped, tag = 'scoped memory for tpu_custom_call.1']
    #allocation7 [shape = 'u8[2048]{0}', space=vmem, size = 0x800, scoped, tag = 'input window, operand 1, single buffered']
    #allocation8 [shape = 's32[1]{0}', space=sflag, size = 0x4, scoped, tag = 'scoped memory for tpu_custom_call.1']
    #allocation9 [shape = 'u8[512]{0}', space=vmem, size = 0x400, scoped, tag = 'output window, operand 0, single buffered']
    %10 = vsyncpa [#allocation5], 0
    %11 = vsyncpa [#allocation8], 0
    %12 = vsyncpa [#allocation6], 0
    // Predicated region
    $region2: #{tpu_custom_call.1} parent=1 // pred_check
      _
    $region3: #{tpu_custom_call.1} parent=1 // pred_check_branch
      %14 = sbr.rel (0) target = $region5
    $region4: #{tpu_custom_call.1} parent=1 // pred_region
      %s16 = ssub.s32 64, 64
      %17 = vsyncadd [#allocation5], %s16
      %s19 = sshll.u32 [#allocation4], 4
      %s20 = int_to_ptr.vmem [resolvable:$true] %s19
      %22 = dma.hbm_to_vmem [thread:$0]  %s0, 64, %s20, [#allocation5]
    $region5: #{tpu_custom_call.1} parent=1 // pred_fallthru
      _
    // Predicated region
    $region6: #{tpu_custom_call.1} parent=1 // pred_check
      _
    $region7: #{tpu_custom_call.1} parent=1 // pred_check_branch
      %24 = sbr.rel (0) target = $region9
    $region8: #{tpu_custom_call.1} parent=1 // pred_region
      %s26 = ssub.s32 64, 64
      %27 = vsyncadd [#allocation8], %s26
      %s29 = sshll.u32 [#allocation7], 4
      %s30 = int_to_ptr.vmem [resolvable:$true] %s29
      %32 = dma.hbm_to_vmem [thread:$0]  %s1, 64, %s30, [#allocation8]
    $region9: #{tpu_custom_call.1} parent=1 // pred_fallthru
      _
    // Predicated region
    $region10: #{tpu_custom_call.1} parent=1 // pred_check
      _
    $region11: #{tpu_custom_call.1} parent=1 // pred_check_branch
      %34 = sbr.rel (0) target = $region13
    $region12: #{tpu_custom_call.1} parent=1 // pred_region
      _
    $region13: #{tpu_custom_call.1} parent=1 // pred_fallthru
      _
    // Predicated region
    $region14: #{tpu_custom_call.1} parent=1 // pred_check
      _
    $region15: #{tpu_custom_call.1} parent=1 // pred_check_branch
      %36 = sbr.rel (0) target = $region17
    $region16: #{tpu_custom_call.1} parent=1 // pred_region
      _
    $region17: #{tpu_custom_call.1} parent=1 // pred_fallthru
      _
    // Predicated region
    $region18: #{tpu_custom_call.1} parent=1 // pred_check
      _
    $region19: #{tpu_custom_call.1} parent=1 // pred_check_branch
      %38 = sbr.rel (0) target = $region21
    $region20: #{tpu_custom_call.1} parent=1 // pred_region
      _
    $region21: #{tpu_custom_call.1} parent=1 // pred_fallthru
      _
    // Predicated region
    $region22: #{tpu_custom_call.1} parent=1 // pred_check
      _
    $region23: #{tpu_custom_call.1} parent=1 // pred_check_branch
      %40 = sbr.rel (0) target = $region25
    $region24: #{tpu_custom_call.1} parent=1 // pred_region
      %41 = dma.done [#allocation5], 64
    $region25: #{tpu_custom_call.1} parent=1 // pred_fallthru
      _
    // Predicated region
    $region26: #{tpu_custom_call.1} parent=1 // pred_check
      _
    $region27: #{tpu_custom_call.1} parent=1 // pred_check_branch
      %43 = sbr.rel (0) target = $region29
    $region28: #{tpu_custom_call.1} parent=1 // pred_region
      %44 = dma.done [#allocation8], 64
    $region29: #{tpu_custom_call.1} parent=1 // pred_fallthru
      _
    %p45 = scmp.eq.s32.totalorder 0, 0
    // Predicated region
    $region30: #{tpu_custom_call.1} parent=1 // pred_check
      %p46 = pneg %p45
    $region31: #{tpu_custom_call.1} parent=1 // pred_check_branch
      %48 = sbr.rel (%p46) target = $region33
    $region32: #{tpu_custom_call.1} parent=1 // pred_region
      %49 = vst [vmem:[#allocation2] sm:$0xf] 0.0
      %50 = vst [vmem:[#allocation3] sm:$0xf] 0.0
    $region33: #{tpu_custom_call.1} parent=1 // pred_fallthru
      _
    %p51 = scmp.lt.s32.totalorder 0, 0
    // Predicated region
    $region34: #{tpu_custom_call.1} parent=1 // pred_check
      %p52 = pneg %p51
    $region35: #{tpu_custom_call.1} parent=1 // pred_check_branch
      %54 = sbr.rel (%p52) target = $region37
    $region36: #{tpu_custom_call.1} parent=1 // pred_region
      %v55 = vld [vmem:[%s2] sm:$0xf]
      %v56 = vld [vmem:[#allocation4] sm:$0xf]
      %v57 = vsub.f32 %v56, %v55
      %v58 = vld [vmem:[#allocation7] sm:$0xf]
      %v59 = vsub.f32 %v58, %v55
      %v60 = vmul.f32 %v57, %v57
      %v61 = vmul.f32 %v59, %v59
      %v62 = vld [vmem:[#allocation2] sm:$0xf]
      %v63 = vadd.f32 %v62, %v60
      %64 = vst [vmem:[#allocation2] sm:$0xf] %v63
      %v65 = vld [vmem:[#allocation3] sm:$0xf]
      %v66 = vadd.f32 %v65, %v61
      %67 = vst [vmem:[#allocation3] sm:$0xf] %v66
    $region37: #{tpu_custom_call.1} parent=1 // pred_fallthru
      _
    // Predicated region
    $region38: #{tpu_custom_call.1} parent=1 // pred_check
      %p68 = pneg %p45
    $region39: #{tpu_custom_call.1} parent=1 // pred_check_branch
      %70 = sbr.rel (%p68) target = $region41
    $region40: #{tpu_custom_call.1} parent=1 // pred_region
      %v71 = vld [vmem:[%s2] sm:$0xf]
      %v72 = vld [vmem:[#allocation4] sm:$0xf]
      %v73 = vsub.f32 %v72, %v71
      %v74 = vld [vmem:[#allocation7] sm:$0xf]
      %v75 = vsub.f32 %v74, %v71
      %v76 = vmul.f32 %v73, %v73
      %v77 = vmul.f32 %v75, %v75
      %v78 = vld [vmem:[#allocation2] sm:$0xf]
      %v79 = vadd.f32 %v78, %v76
      %80 = vst [vmem:[#allocation2] sm:$0xf] %v79
      %v81 = vld [vmem:[#allocation3] sm:$0xf]
      %v82 = vadd.f32 %v81, %v77
      %83 = vst [vmem:[#allocation3] sm:$0xf] %v82
      %v84 = vld [vmem:[#allocation2] sm:$0xf]
      %vm85 = vcmask 1043456
      %v86 = vsel %vm85, %v84, 0.0
      %87 = vadd.xlane.f32.xlu0 %v86
      %v88 = vpop.xlane.xlu0 %87
      %v89 = vrot.slane %v88, 4
      %v90 = vadd.f32 %v88, %v89
      %v91 = vrot.slane %v90, 2
      %v92 = vadd.f32 %v90, %v91
      %v93 = vrot.slane %v92, 1
      %v94 = vadd.f32 %v92, %v93
      %s95 = vtos %v94
      %s96 = smul.f32 %s95, 0.001953125
      %v97 = vld [vmem:[#allocation3] sm:$0xf]
      %v98 = vsel %vm85, %v97, 0.0
      %99 = vadd.xlane.f32.xlu0 %v98
      %v100 = vpop.xlane.xlu0 %99
      %v101 = vrot.slane %v100, 4
      %v102 = vadd.f32 %v100, %v101
      %v103 = vrot.slane %v102, 2
      %v104 = vadd.f32 %v102, %v103
      %v105 = vrot.slane %v104, 1
      %v106 = vadd.f32 %v104, %v105
      %s107 = vtos %v106
      %s108 = smul.f32 %s107, 0.001953125
      %v109 = vld [vmem:[%s3] sm:$0x3]
      %v110 = vld [vmem:[%s4] sm:$0x3]
      %v111 = vcvt.s32.f32 %v110
      %v112 = vsub.f32 %v109, %v111
      %v113 = vand.u32 2147483647, %v112
      %vm114 = vcmask 58368
      %v115 = vsel %vm114, %v113, 0.0
      %116 = vadd.xlane.f32.xlu0 %v115
      %v117 = vpop.xlane.xlu0 %116
      %v118 = vrot.slane %v117, 4
      %v119 = vadd.f32 %v117, %v118
      %v120 = vrot.slane %v119, 2
      %v121 = vadd.f32 %v119, %v120
      %v122 = vrot.slane %v121, 1
      %v123 = vadd.f32 %v121, %v122
      %s124 = vtos %v123
      %s125 = smul.f32 %s124, 0.0625
      %v126 = vlaneseq
      %v127 = vand.u32 %v126, 127
      %vm128 = vcmp.eq.s32.totalorder %v127, 0
      %vm129 = vcmp.eq.s32.totalorder %v127, 1
      %vm130 = vcmp.eq.s32.totalorder %v127, 2
      %v131 = vstv %s125
      %v132 = vsel %vm130, %v131, 0.0
      %v133 = vstv %s108
      %v134 = vsel %vm129, %v133, %v132
      %v135 = vstv %s96
      %v136 = vsel %vm128, %v135, %v134
      %137 = vst [vmem:[#allocation9] sm:$0x1] %v136
    $region41: #{tpu_custom_call.1} parent=1 // pred_fallthru
      _
    // Predicated region
    $region42: #{tpu_custom_call.1} parent=1 // pred_check
      _
    $region43: #{tpu_custom_call.1} parent=1 // pred_check_branch
      %139 = sbr.rel (0) target = $region45
    $region44: #{tpu_custom_call.1} parent=1 // pred_region
      %s141 = ssub.s32 16, 16
      %142 = vsyncadd [#allocation6], %s141
      %s144 = sshll.u32 [#allocation9], 4
      %s145 = int_to_ptr.vmem [resolvable:$true] %s144
      %147 = dma.vmem_to_hbm [thread:$0]  %s145, 16, %s5, [#allocation6]
    $region45: #{tpu_custom_call.1} parent=1 // pred_fallthru
      _
    // Predicated region
    $region46: #{tpu_custom_call.1} parent=1 // pred_check
      _
    $region47: #{tpu_custom_call.1} parent=1 // pred_check_branch
      %149 = sbr.rel (0) target = $region49
    $region48: #{tpu_custom_call.1} parent=1 // pred_region
      %150 = dma.done [#allocation6], 16
    $region49: #{tpu_custom_call.1} parent=1 // pred_fallthru
      _
    %151 = vsyncpa [#allocation5], 1
    %152 = vsyncpa [#allocation8], 1
    %153 = vsyncpa [#allocation6], 1

</llo_original>
